<compile_context>
chip_gen: v5e
topology: v5e:2x2
jax: 0.10.0
libtpu: 0.0.40
codegen_flags: <defaults>
</compile_context>

<pallas_src>
import jax
import jax.numpy as jnp
from jax.experimental import pallas as pl
from jax.experimental.pallas import tpu as pltpu


def _ceil_to(x, m):
    return -(-x // m) * m


# ---------------------------------------------------------------------------
# Parameter / kernel-weight construction (glue, tiny K-sized elementwise math)
# ---------------------------------------------------------------------------
def build_voigt_weighted_kernel(wavelengths, kernel_size, key,
                                slit_width=5000.0, slit_spacing=1667.0,
                                blaze_angle=0.09, resolution=0.36):
    K = kernel_size
    assert wavelengths.shape[0] >= K, "wavelengths must have at least kernel_size entries"
    eps = jnp.float32(1e-30)

    kg, kl = jax.random.split(key)
    # deterministic stand-ins for torch.rand(1)-initialized learnable sigmas
    sigma_g = jax.random.uniform(kg, (1,), dtype=jnp.float32) * (K / 30.0)
    sigma_l = jax.random.uniform(kl, (1,), dtype=jnp.float32) * (K / 60.0)

    # base = linspace(-K//2, K//2, K) * resolution   (Python: (-K)//2)
    base = jnp.linspace((-K) // 2, K // 2, K).astype(jnp.float32) * resolution

    # diffraction pattern (sinc^2 * sinc^2), frozen parameters
    wl = wavelengths[:K].astype(jnp.float32)
    beta = jnp.pi * slit_width * jnp.sin(jnp.float32(blaze_angle)) / wl
    gamma = jnp.pi * slit_spacing * jnp.sin(jnp.float32(blaze_angle)) / wl
    dp = (jnp.sin(beta) / beta) ** 2 * (jnp.sin(gamma) / gamma) ** 2

    g = jnp.exp(-0.5 * (base / sigma_g) ** 2)
    g = g / (g.sum() + eps)                       # eps guards against tiny-sigma underflow
    lor = 1.0 / (1.0 + (base / sigma_l) ** 2)
    lor = lor / (lor.sum() + eps)
    v = g * lor
    v = v / (v.sum() + eps)

    w = v * dp
    w = w / (w.sum() + eps)
    return w  # shape (K,)


# ---------------------------------------------------------------------------
# Pallas conv1d kernel (the hot path)
# ---------------------------------------------------------------------------
def _make_conv_kernel(K, TLO):
    def kernel(w_ref, b_ref, x_ref, xh_ref, o_ref):
        # w_ref : SMEM f32[K]        conv taps
        # b_ref : SMEM f32[1]        bias
        # x_ref : VMEM f32[RT, TLO]  main input tile (left halo already folded in globally)
        # xh_ref: VMEM f32[RT, H]    right halo = first H lanes of the next tile
        # o_ref : VMEM f32[RT, TLO]
        xv = jnp.concatenate([x_ref[...], xh_ref[...]], axis=-1)  # load tile ONCE
        acc = w_ref[0] * xv[:, 0:TLO]
        for k in range(1, K):                      # static unrolled shift-MAC (value slices)
            acc = acc + w_ref[k] * xv[:, k:k + TLO]
        o_ref[...] = acc + b_ref[0]                # single lane-dense store per output vreg
    return kernel


def broadening_conv1d_pallas(x, weights, bias, stride=1):
    N, C, L = x.shape
    assert C == 1, "BroadeningConvLayer kernel has in_channels = out_channels = 1"
    K = weights.shape[-1]
    pad = K // 2
    L_full = L + 2 * pad - K + 1                 # stride-1 output length
    L_out = (L + 2 * pad - K) // stride + 1      # strided output length

    # --- tiling ------------------------------------------------------------
    H = _ceil_to(max(K - 1, 1), 128)             # right-halo block width (lane multiple)
    TLO = min(_ceil_to(L_full, 128), 2048)       # lane-dense output tile
    TLO = _ceil_to(TLO, H)                       # must be a multiple of H for halo indexing
    nL = pl.cdiv(L_full, TLO)

    RT = min(_ceil_to(N, 8), 256)                # batch-row tile (sublane multiple)
    N_pad = _ceil_to(N, RT)

    # padded width: nL main tiles + one halo block of zeros for the last tile
    W_pad = nL * TLO + H

    # --- single merged pad: conv left-halo + right zeros + batch rows -------
    x2 = x[:, 0, :].astype(jnp.float32)
    xpad = jnp.pad(x2, ((0, N_pad - N), (pad, W_pad - L - pad)))

    grid = (N_pad // RT, nL)
    blocks_per_halo = TLO // H

    out = pl.pallas_call(
        _make_conv_kernel(K, TLO),
        out_shape=jax.ShapeDtypeStruct((N_pad, nL * TLO), jnp.float32),
        grid_spec=pltpu.PrefetchScalarGridSpec(
            num_scalar_prefetch=0,
            grid=grid,
            in_specs=[
                pl.BlockSpec(memory_space=pltpu.MemorySpace.SMEM),   # conv taps (whole array)
                pl.BlockSpec(memory_space=pltpu.MemorySpace.SMEM),   # bias
                pl.BlockSpec((RT, TLO), lambda i, j: (i, j)),        # main input tile
                pl.BlockSpec((RT, H),                                # right-halo view of same array
                             lambda i, j: (i, (j + 1) * blocks_per_halo)),
            ],
            out_specs=pl.BlockSpec((RT, TLO), lambda i, j: (i, j)),
        ),
        compiler_params=pltpu.CompilerParams(
            dimension_semantics=("parallel", "parallel")),
    )(weights.astype(jnp.float32), bias.astype(jnp.float32), xpad, xpad)

    out = out[:N, :L_full]
    if stride > 1:
        # TODO(synk): fold stride subsampling into the kernel (strided lane store)
        out = out[:, ::stride][:, :L_out]
    return out[:, None, :]                       # back to NCL


if __name__ == "__main__":
    key = jax.random.PRNGKey(0)
    kx, kparam = jax.random.split(key)

    # --- primary test: batch=2, channels=1, length=128, K=9, stride=1 -------
    N, C, L = 2, 1, 128
    K = 9
    stride = 1

    wavelengths = jnp.linspace(4000.0, 7000.0, 128, dtype=jnp.float32)
    x = jax.random.normal(kx, (N, C, L), dtype=jnp.float32)
    weights = build_voigt_weighted_kernel(wavelengths, K, kparam)
    bias = jnp.zeros((1,), jnp.float32)          # nn.Parameter(torch.zeros(1))

    out = broadening_conv1d_pallas(x, weights, bias, stride=stride)
    out = jax.block_until_ready(out)

    ref = jax.lax.conv_general_dilated(
        x, weights.reshape(1, 1, K), window_strides=(stride,),
        padding=[(K // 2, K // 2)], dimension_numbers=("NCH", "OIH", "NCH"))
    ref = ref + bias.reshape(1, -1, 1)

    assert out.shape == ref.shape, (out.shape, ref.shape)
    assert jnp.allclose(out, ref, atol=1e-5, rtol=1e-5)

    # --- secondary sanity check: odd length, different K (non-divisible tile) ---
    N2, L2, K2 = 3, 300, 7
    x2 = jax.random.normal(jax.random.PRNGKey(1), (N2, 1, L2), dtype=jnp.float32)
    w2 = build_voigt_weighted_kernel(
        jnp.linspace(4000.0, 7000.0, 300, dtype=jnp.float32), K2, jax.random.PRNGKey(2))
    b2 = jnp.array([0.25], jnp.float32)
    out2 = jax.block_until_ready(broadening_conv1d_pallas(x2, w2, b2, stride=1))
    ref2 = jax.lax.conv_general_dilated(
        x2, w2.reshape(1, 1, K2), window_strides=(1,),
        padding=[(K2 // 2, K2 // 2)], dimension_numbers=("NCH", "OIH", "NCH"))
    ref2 = ref2 + b2.reshape(1, -1, 1)
    assert out2.shape == ref2.shape, (out2.shape, ref2.shape)
    assert jnp.allclose(out2, ref2, atol=1e-5, rtol=1e-5)

    print("KERNEL_OK")
</pallas_src>

<mosaic_0001>
module attributes {stable_mosaic.version = 11 : i64} {
  func.func @kernel(%arg0: i32, %arg1: i32, %arg2: memref<9xf32, #tpu.memory_space<smem>>, %arg3: memref<1xf32, #tpu.memory_space<smem>>, %arg4: memref<8x128xf32, #tpu.memory_space<vmem>>, %arg5: memref<8x128xf32, #tpu.memory_space<vmem>>, %arg6: memref<8x128xf32, #tpu.memory_space<vmem>>) attributes {dimension_semantics = [#tpu.dimension_semantics<parallel>, #tpu.dimension_semantics<parallel>], iteration_bounds = array<i64: 1, 1>, scalar_prefetch = 0 : i64, scratch_operands = 0 : i64, tpu.core_type = #tpu.core_type<tc>, window_params = [{transform_indices = @transform_0, window_bounds = array<i64: 9>}, {transform_indices = @transform_1, window_bounds = array<i64: 1>}, {transform_indices = @transform_2, window_bounds = array<i64: 8, 128>}, {transform_indices = @transform_3, window_bounds = array<i64: 8, 128>}, {transform_indices = @transform_4, window_bounds = array<i64: 8, 128>}]} {
    %c0 = arith.constant 0 : index
    %c0_0 = arith.constant 0 : index
    %0 = vector.load %arg4[%c0, %c0_0] : memref<8x128xf32, #tpu.memory_space<vmem>>, vector<8x128xf32>
    %c0_1 = arith.constant 0 : index
    %c0_2 = arith.constant 0 : index
    %1 = vector.load %arg5[%c0_1, %c0_2] : memref<8x128xf32, #tpu.memory_space<vmem>>, vector<8x128xf32>
    %2 = tpu.concatenate %0, %1 in 1 : vector<8x128xf32>, vector<8x128xf32> -> vector<8x256xf32>
    %c0_3 = arith.constant 0 : index
    %3 = memref.load %arg2[%c0_3] : memref<9xf32, #tpu.memory_space<smem>>
    %4 = vector.extract_strided_slice %2 {offsets = [0, 0], sizes = [8, 128], strides = [1, 1]} : vector<8x256xf32> to vector<8x128xf32>
    %5 = vector.broadcast %3 : f32 to vector<8x128xf32>
    %6 = arith.mulf %5, %4 : vector<8x128xf32>
    %c1 = arith.constant 1 : index
    %7 = memref.load %arg2[%c1] : memref<9xf32, #tpu.memory_space<smem>>
    %8 = vector.extract_strided_slice %2 {offsets = [0, 1], sizes = [8, 128], strides = [1, 1]} : vector<8x256xf32> to vector<8x128xf32>
    %9 = vector.broadcast %7 : f32 to vector<8x128xf32>
    %10 = arith.mulf %9, %8 : vector<8x128xf32>
    %11 = arith.addf %6, %10 : vector<8x128xf32>
    %c2 = arith.constant 2 : index
    %12 = memref.load %arg2[%c2] : memref<9xf32, #tpu.memory_space<smem>>
    %13 = vector.extract_strided_slice %2 {offsets = [0, 2], sizes = [8, 128], strides = [1, 1]} : vector<8x256xf32> to vector<8x128xf32>
    %14 = vector.broadcast %12 : f32 to vector<8x128xf32>
    %15 = arith.mulf %14, %13 : vector<8x128xf32>
    %16 = arith.addf %11, %15 : vector<8x128xf32>
    %c3 = arith.constant 3 : index
    %17 = memref.load %arg2[%c3] : memref<9xf32, #tpu.memory_space<smem>>
    %18 = vector.extract_strided_slice %2 {offsets = [0, 3], sizes = [8, 128], strides = [1, 1]} : vector<8x256xf32> to vector<8x128xf32>
    %19 = vector.broadcast %17 : f32 to vector<8x128xf32>
    %20 = arith.mulf %19, %18 : vector<8x128xf32>
    %21 = arith.addf %16, %20 : vector<8x128xf32>
    %c4 = arith.constant 4 : index
    %22 = memref.load %arg2[%c4] : memref<9xf32, #tpu.memory_space<smem>>
    %23 = vector.extract_strided_slice %2 {offsets = [0, 4], sizes = [8, 128], strides = [1, 1]} : vector<8x256xf32> to vector<8x128xf32>
    %24 = vector.broadcast %22 : f32 to vector<8x128xf32>
    %25 = arith.mulf %24, %23 : vector<8x128xf32>
    %26 = arith.addf %21, %25 : vector<8x128xf32>
    %c5 = arith.constant 5 : index
    %27 = memref.load %arg2[%c5] : memref<9xf32, #tpu.memory_space<smem>>
    %28 = vector.extract_strided_slice %2 {offsets = [0, 5], sizes = [8, 128], strides = [1, 1]} : vector<8x256xf32> to vector<8x128xf32>
    %29 = vector.broadcast %27 : f32 to vector<8x128xf32>
    %30 = arith.mulf %29, %28 : vector<8x128xf32>
    %31 = arith.addf %26, %30 : vector<8x128xf32>
    %c6 = arith.constant 6 : index
    %32 = memref.load %arg2[%c6] : memref<9xf32, #tpu.memory_space<smem>>
    %33 = vector.extract_strided_slice %2 {offsets = [0, 6], sizes = [8, 128], strides = [1, 1]} : vector<8x256xf32> to vector<8x128xf32>
    %34 = vector.broadcast %32 : f32 to vector<8x128xf32>
    %35 = arith.mulf %34, %33 : vector<8x128xf32>
    %36 = arith.addf %31, %35 : vector<8x128xf32>
    %c7 = arith.constant 7 : index
    %37 = memref.load %arg2[%c7] : memref<9xf32, #tpu.memory_space<smem>>
    %38 = vector.extract_strided_slice %2 {offsets = [0, 7], sizes = [8, 128], strides = [1, 1]} : vector<8x256xf32> to vector<8x128xf32>
    %39 = vector.broadcast %37 : f32 to vector<8x128xf32>
    %40 = arith.mulf %39, %38 : vector<8x128xf32>
    %41 = arith.addf %36, %40 : vector<8x128xf32>
    %c8 = arith.constant 8 : index
    %42 = memref.load %arg2[%c8] : memref<9xf32, #tpu.memory_space<smem>>
    %43 = vector.extract_strided_slice %2 {offsets = [0, 8], sizes = [8, 128], strides = [1, 1]} : vector<8x256xf32> to vector<8x128xf32>
    %44 = vector.broadcast %42 : f32 to vector<8x128xf32>
    %45 = arith.mulf %44, %43 : vector<8x128xf32>
    %46 = arith.addf %41, %45 : vector<8x128xf32>
    %c0_4 = arith.constant 0 : index
    %47 = memref.load %arg3[%c0_4] : memref<1xf32, #tpu.memory_space<smem>>
    %48 = vector.broadcast %47 : f32 to vector<8x128xf32>
    %49 = arith.addf %46, %48 : vector<8x128xf32>
    %c0_5 = arith.constant 0 : index
    %c0_6 = arith.constant 0 : index
    %50 = vector.load %arg6[%c0_5, %c0_6] : memref<8x128xf32, #tpu.memory_space<vmem>>, vector<8x128xf32>
    tpu.vector_store %arg6[%c0_5, %c0_6], %49 {strides = array<i32>} : memref<8x128xf32, #tpu.memory_space<vmem>>, vector<8x128xf32>,
    return
  }
  func.func @transform_0(%arg0: i32, %arg1: i32) -> i32 {
    %c0_i32 = arith.constant 0 : i32
    %c0_i32_0 = arith.constant 0 : i32
    return %c0_i32 : i32
  }
  func.func @transform_1(%arg0: i32, %arg1: i32) -> i32 {
    %c0_i32 = arith.constant 0 : i32
    %c0_i32_0 = arith.constant 0 : i32
    return %c0_i32 : i32
  }
  func.func @transform_2(%arg0: i32, %arg1: i32) -> (i32, i32) {
    %c0_i32 = arith.constant 0 : i32
    return %arg0, %arg1 : i32, i32
  }
  func.func @transform_3(%arg0: i32, %arg1: i32) -> (i32, i32) {
    %c1_i32 = arith.constant 1 : i32
    %0 = arith.addi %arg1, %c1_i32 : i32
    %c1_i32_0 = arith.constant 1 : i32
    %1 = arith.muli %0, %c1_i32_0 : i32
    %c0_i32 = arith.constant 0 : i32
    return %arg0, %1 : i32, i32
  }
  func.func @transform_4(%arg0: i32, %arg1: i32) -> (i32, i32) {
    %c0_i32 = arith.constant 0 : i32
    return %arg0, %arg1 : i32, i32
  }
}

</mosaic_0001>

<llo_original>
// kernel: tpu_custom_call.1
$region0: #{tpu_custom_call.1}
  #allocation0 [shape = 'u32[]', space=smem, size = 0x4, offset = 0x4, fixed_abs, tag = 'smem constant byte address 0x4 - core index']
  #allocation1 [shape = 'u32[72,128]{1,0:T(1,128)}', space=vmem, size = 0x9000, scoped, tag = 'internal scratch']
  #allocation2 [shape = 'f32[1]{0:T(128)S(6)}', space=smem, size = 0x200, scoped, tag = 'scoped memory for tpu_custom_call.1']
  %s0 = inlined_call_operand.vmem [shape: f32[9], index: 0, kind: input, shape index: {}]
  %s1 = inlined_call_operand.<no memory space> [shape: f32[1], index: 1, kind: input, shape index: {}]
  %s2 = inlined_call_operand.hbm [shape: f32[8,256], index: 2, kind: input, shape index: {}]
  %s3 = inlined_call_operand.hbm [shape: f32[8,256], index: 3, kind: input, shape index: {}]
  %s4 = inlined_call_operand.hbm [shape: f32[8,128], index: 4, kind: output, shape index: {}]
  %s5 = sld [smem:[#allocation0]]
  $region38: #{tpu_custom_call.1} parent=0
    _
  %s7 = ssub.s32 1, %s5
  %s8 = scalar_select 0, %s7, %s5
  %9 = sst [smem:[#allocation2]] %s1
  $region1: #{tpu_custom_call.1} parent=0
    #allocation3 [shape = 'u8[512]{0}', space=smem, size = 0x200, scoped, tag = 'input window, operand 0, single buffered']
    #allocation4 [shape = 's32[1]{0}', space=sflag, size = 0x4, scoped, tag = 'scoped memory for tpu_custom_call.1']
    #allocation5 [shape = 's32[1]{0}', space=sflag, size = 0x4, scoped, tag = 'scoped memory for tpu_custom_call.1']
    #allocation6 [shape = 's32[1]{0}', space=sflag, size = 0x4, scoped, tag = 'scoped memory for tpu_custom_call.1']
    #allocation7 [shape = 'u8[4096]{0}', space=vmem, size = 0x1000, scoped, tag = 'input window, operand 2, single buffered']
    #allocation8 [shape = 'u8[4096]{0}', space=vmem, size = 0x1000, scoped, tag = 'input window, operand 3, single buffered']
    #allocation9 [shape = 's32[1]{0}', space=sflag, size = 0x4, scoped, tag = 'scoped memory for tpu_custom_call.1']
    #allocation10 [shape = 'u8[4096]{0}', space=vmem, size = 0x1000, scoped, tag = 'output window, operand 0, single buffered']
    %10 = vsyncpa [#allocation6], 0
    %11 = vsyncpa [#allocation4], 0
    %12 = vsyncpa [#allocation9], 0
    %13 = vsyncpa [#allocation5], 0
    // Predicated region
    $region2: #{tpu_custom_call.1} parent=1 // pred_check
      _
    $region3: #{tpu_custom_call.1} parent=1 // pred_check_branch
      %15 = sbr.rel (0) target = $region5
    $region4: #{tpu_custom_call.1} parent=1 // pred_region
      %17 = vsyncadd [#allocation6], 0
      %s19 = sshll.u32 %s0, 4
      %s20 = int_to_ptr.vmem [resolvable:$true] %s19
      %22 = dma.vmem_to_smem %s20, 16, [#allocation3], [#allocation6]
    $region5: #{tpu_custom_call.1} parent=1 // pred_fallthru
      _
    // Predicated region
    $region6: #{tpu_custom_call.1} parent=1 // pred_check
      _
    $region7: #{tpu_custom_call.1} parent=1 // pred_check_branch
      %24 = sbr.rel (0) target = $region9
    $region8: #{tpu_custom_call.1} parent=1 // pred_region
      _
    $region9: #{tpu_custom_call.1} parent=1 // pred_fallthru
      _
    // Predicated region
    $region10: #{tpu_custom_call.1} parent=1 // pred_check
      _
    $region11: #{tpu_custom_call.1} parent=1 // pred_check_branch
      %26 = sbr.rel (0) target = $region13
    $region12: #{tpu_custom_call.1} parent=1 // pred_region
      %28 = vsyncadd [#allocation4], 0
      %s30 = sshll.u32 %s2, 4
      %s31 = int_to_ptr.hbm [resolvable:$true] %s30
      %s32 = sshll.u32 [#allocation7], 4
      %s33 = int_to_ptr.vmem [resolvable:$true] %s32
      %35 = dma.hbm_to_vmem [thread:$0]  %s31, 128, %s33, [#allocation4]
    $region13: #{tpu_custom_call.1} parent=1 // pred_fallthru
      _
    // Predicated region
    $region14: #{tpu_custom_call.1} parent=1 // pred_check
      _
    $region15: #{tpu_custom_call.1} parent=1 // pred_check_branch
      %37 = sbr.rel (0) target = $region17
    $region16: #{tpu_custom_call.1} parent=1 // pred_region
      %s38 = sadd.s32 0, 1
      %40 = vsyncadd [#allocation9], 0
      %s41 = smul.addr %s38, 8
      %s42 = scalar_lea.hbm %s3, %s41
      %s44 = sshll.u32 %s42, 4
      %s45 = int_to_ptr.hbm [resolvable:$true] %s44
      %s46 = sshll.u32 [#allocation8], 4
      %s47 = int_to_ptr.vmem [resolvable:$true] %s46
      %49 = dma.hbm_to_vmem [thread:$0]  %s45, 128, %s47, [#allocation9]
    $region17: #{tpu_custom_call.1} parent=1 // pred_fallthru
      _
    // Predicated region
    $region18: #{tpu_custom_call.1} parent=1 // pred_check
      _
    $region19: #{tpu_custom_call.1} parent=1 // pred_check_branch
      %51 = sbr.rel (0) target = $region21
    $region20: #{tpu_custom_call.1} parent=1 // pred_region
      %53 = dma.done [#allocation6], 16
    $region21: #{tpu_custom_call.1} parent=1 // pred_fallthru
      _
    // Predicated region
    $region22: #{tpu_custom_call.1} parent=1 // pred_check
      _
    $region23: #{tpu_custom_call.1} parent=1 // pred_check_branch
      %55 = sbr.rel (0) target = $region25
    $region24: #{tpu_custom_call.1} parent=1 // pred_region
      %57 = dma.done [#allocation4], 128
    $region25: #{tpu_custom_call.1} parent=1 // pred_fallthru
      _
    // Predicated region
    $region26: #{tpu_custom_call.1} parent=1 // pred_check
      _
    $region27: #{tpu_custom_call.1} parent=1 // pred_check_branch
      %59 = sbr.rel (0) target = $region29
    $region28: #{tpu_custom_call.1} parent=1 // pred_region
      %61 = dma.done [#allocation9], 128
    $region29: #{tpu_custom_call.1} parent=1 // pred_fallthru
      _
    %62 = sfence
    %s63 = sadd.s32 0, 1
    %v64 = vld [vmem:[#allocation7] sm:$0xff]
    %v65 = vld [vmem:[#allocation8] sm:$0xff]
    %s66 = sld [smem:[#allocation3]]
    %v67 = vstv %s66
    %v68 = vmul.f32 %v67, %v64
    %s69 = sld [smem:[#allocation3 + $0x1]]
    %v70 = vstv %s69
    %v71 = vmul.f32 %v70, %v64
    %v72 = vmul.f32 %v70, %v65
    %75 = vrot.lane.b32.xlu0 %v71, 127
    %v76 = vpop.permute.xlu0 %75
    %77 = vrot.lane.b32.xlu0 %v72, 127
    %v78 = vpop.permute.xlu0 %77
    %vm79 = vcmask 1039360
    %v80 = vsel %vm79, %v76, %v78
    %v82 = vadd.f32 %v68, %v80
    %s83 = sld [smem:[#allocation3 + $0x2]]
    %v84 = vstv %s83
    %v85 = vmul.f32 %v84, %v64
    %v86 = vmul.f32 %v84, %v65
    %89 = vrot.lane.b32.xlu0 %v85, 126
    %v90 = vpop.permute.xlu0 %89
    %91 = vrot.lane.b32.xlu0 %v86, 126
    %v92 = vpop.permute.xlu0 %91
    %vm93 = vcmask 1031168
    %v94 = vsel %vm93, %v90, %v92
    %v96 = vadd.f32 %v82, %v94
    %s97 = sld [smem:[#allocation3 + $0x3]]
    %v98 = vstv %s97
    %v99 = vmul.f32 %v98, %v64
    %v100 = vmul.f32 %v98, %v65
    %103 = vrot.lane.b32.xlu0 %v99, 125
    %v104 = vpop.permute.xlu0 %103
    %105 = vrot.lane.b32.xlu0 %v100, 125
    %v106 = vpop.permute.xlu0 %105
    %vm107 = vcmask 1022976
    %v108 = vsel %vm107, %v104, %v106
    %v110 = vadd.f32 %v96, %v108
    %s111 = sld [smem:[#allocation3 + $0x4]]
    %v112 = vstv %s111
    %v113 = vmul.f32 %v112, %v64
    %v114 = vmul.f32 %v112, %v65
    %117 = vrot.lane.b32.xlu0 %v113, 124
    %v118 = vpop.permute.xlu0 %117
    %119 = vrot.lane.b32.xlu0 %v114, 124
    %v120 = vpop.permute.xlu0 %119
    %vm121 = vcmask 1014784
    %v122 = vsel %vm121, %v118, %v120
    %v124 = vadd.f32 %v110, %v122
    %s125 = sld [smem:[#allocation3 + $0x5]]
    %v126 = vstv %s125
    %v127 = vmul.f32 %v126, %v64
    %v128 = vmul.f32 %v126, %v65
    %131 = vrot.lane.b32.xlu0 %v127, 123
    %v132 = vpop.permute.xlu0 %131
    %133 = vrot.lane.b32.xlu0 %v128, 123
    %v134 = vpop.permute.xlu0 %133
    %vm135 = vcmask 1006592
    %v136 = vsel %vm135, %v132, %v134
    %v138 = vadd.f32 %v124, %v136
    %s139 = sld [smem:[#allocation3 + $0x6]]
    %v140 = vstv %s139
    %v141 = vmul.f32 %v140, %v64
    %v142 = vmul.f32 %v140, %v65
    %145 = vrot.lane.b32.xlu0 %v141, 122
    %v146 = vpop.permute.xlu0 %145
    %147 = vrot.lane.b32.xlu0 %v142, 122
    %v148 = vpop.permute.xlu0 %147
    %vm149 = vcmask 998400
    %v150 = vsel %vm149, %v146, %v148
    %v152 = vadd.f32 %v138, %v150
    %s153 = sld [smem:[#allocation3 + $0x7]]
    %v154 = vstv %s153
    %v155 = vmul.f32 %v154, %v64
    %v156 = vmul.f32 %v154, %v65
    %159 = vrot.lane.b32.xlu0 %v155, 121
    %v160 = vpop.permute.xlu0 %159
    %161 = vrot.lane.b32.xlu0 %v156, 121
    %v162 = vpop.permute.xlu0 %161
    %vm163 = vcmask 990208
    %v164 = vsel %vm163, %v160, %v162
    %v166 = vadd.f32 %v152, %v164
    %s167 = sld [smem:[#allocation3 + $0x8]]
    %v168 = vstv %s167
    %v169 = vmul.f32 %v168, %v64
    %v170 = vmul.f32 %v168, %v65
    %173 = vrot.lane.b32.xlu0 %v169, 120
    %v174 = vpop.permute.xlu0 %173
    %175 = vrot.lane.b32.xlu0 %v170, 120
    %v176 = vpop.permute.xlu0 %175
    %vm177 = vcmask 982016
    %v178 = vsel %vm177, %v174, %v176
    %v180 = vadd.f32 %v166, %v178
    %s181 = sld [smem:[#allocation2]]
    %v182 = vstv %s181
    %v183 = vadd.f32 %v180, %v182
    %184 = vst [vmem:[#allocation10] sm:$0xff] %v183
    // Predicated region
    $region30: #{tpu_custom_call.1} parent=1 // pred_check
      _
    $region31: #{tpu_custom_call.1} parent=1 // pred_check_branch
      %186 = sbr.rel (0) target = $region33
    $region32: #{tpu_custom_call.1} parent=1 // pred_region
      %188 = vsyncadd [#allocation5], 0
      %s190 = sshll.u32 [#allocation10], 4
      %s191 = int_to_ptr.vmem [resolvable:$true] %s190
      %s192 = sshll.u32 %s4, 4
      %s193 = int_to_ptr.hbm [resolvable:$true] %s192
      %195 = dma.vmem_to_hbm [thread:$0]  %s191, 128, %s193, [#allocation5]
    $region33: #{tpu_custom_call.1} parent=1 // pred_fallthru
      _
    // Predicated region
    $region34: #{tpu_custom_call.1} parent=1 // pred_check
      _
    $region35: #{tpu_custom_call.1} parent=1 // pred_check_branch
      %197 = sbr.rel (0) target = $region37
    $region36: #{tpu_custom_call.1} parent=1 // pred_region
      %199 = dma.done [#allocation5], 128
    $region37: #{tpu_custom_call.1} parent=1 // pred_fallthru
      _
    %200 = vsyncpa [#allocation4], 1
    %201 = vsyncpa [#allocation9], 1
    %202 = vsyncpa [#allocation5], 1
    %203 = vsyncpa [#allocation6], 1

</llo_original>
